<compile_context>
chip_gen: v7x
topology: tpu7x:2x2x1
jax: 0.10.0
libtpu: 0.0.40
codegen_flags: <defaults>
</compile_context>

<pallas_src>
import functools

import jax
import jax.numpy as jnp
from jax import lax
from jax.experimental import pallas as pl
from jax.experimental.pallas import tpu as pltpu

EPS = 1e-08
LANES = 128
TILE_BYTES = 2 * 1024 * 1024          # per-input, per-buffer tile target
VMEM_LIMIT_BYTES = 32 * 1024 * 1024   # explicit scoped-VMEM limit (safe on all gens)


def _sublanes(dt):
    # Native sublane multiple per dtype width (f32 -> 8, bf16/f16 -> 16, 8-bit -> 32).
    return {4: 8, 2: 16, 1: 32}.get(jnp.dtype(dt).itemsize, 8)


def _fidelity_kernel(p_ref, g_ref, out_ref, *, n_valid, tile_rows, chunk_rows,
                     needs_mask, unroll):
    """One grid step: partial sum of sqrt(p*g+eps) + sqrt((1-p)*(1-g)+eps).

    p_ref, g_ref : VMEM (tile_rows, 128) input tiles (native dtype)
    out_ref      : VMEM (8, 128) f32 lane-dense per-block partial sum
    The `1 -` and the division by N happen in the wrapper.
    """
    chunks = tile_rows // chunk_rows
    step = pl.program_id(0)

    def term(p, g):
        p = p.astype(jnp.float32)
        g = g.astype(jnp.float32)
        return jnp.sqrt(p * g + EPS) + jnp.sqrt((1.0 - p) * (1.0 - g) + EPS)

    def make_body(masked):
        if masked:
            full_rows = n_valid // LANES      # rows fully inside the valid range
            rem_lanes = n_valid % LANES       # valid lanes in the boundary row
            sub_ids = lax.broadcasted_iota(jnp.int32, (chunk_rows, LANES), 0)
            lane_ids = lax.broadcasted_iota(jnp.int32, (chunk_rows, LANES), 1)

        def body(i, acc):
            r0 = pl.multiple_of(i * chunk_rows, chunk_rows)
            t = term(p_ref[pl.ds(r0, chunk_rows), :],
                     g_ref[pl.ds(r0, chunk_rows), :])
            if masked:
                # Mask BEFORE accumulating so padded / edge-block elements
                # contribute exactly 0 to the sum.  Row + boundary-lane
                # compares avoid a flattened int32 index (no overflow).
                grow = step * tile_rows + r0 + sub_ids
                valid = (grow < full_rows) | (
                    (grow == full_rows) & (lane_ids < rem_lanes))
                t = jnp.where(valid, t, 0.0)
            return acc + t

        return body

    def run(masked):
        acc0 = jnp.zeros((chunk_rows, LANES), jnp.float32)
        acc = lax.fori_loop(0, chunks, make_body(masked), acc0, unroll=unroll)
        # chunk_rows is 8/16/32 -> at most a 4-vreg fold into the (8,128) block.
        out_ref[...] = acc.reshape(-1, 8, LANES).sum(axis=0)

    if not needs_mask:
        run(masked=False)
    else:
        last = pl.num_programs(0) - 1

        @pl.when(step != last)
        def _():
            run(masked=False)

        @pl.when(step == last)
        def _():
            run(masked=True)


def fidelity_loss(p, g):
    """Pallas TPU implementation of Fidelity_Loss.forward(p, g) -> scalar f32."""
    p_flat = jnp.ravel(p)
    g_flat = jnp.ravel(g)
    n = p_flat.shape[0]

    sublane = max(_sublanes(p_flat.dtype), _sublanes(g_flat.dtype))
    align = sublane * LANES

    # Tiny pad (< align elements) only so the flat vector reshapes to (rows, 128).
    n_pad = ((n + align - 1) // align) * align
    pad = n_pad - n
    if pad:
        p_flat = jnp.pad(p_flat, (0, pad))
        g_flat = jnp.pad(g_flat, (0, pad))

    rows = n_pad // LANES
    p2d = p_flat.reshape(rows, LANES)
    g2d = g_flat.reshape(rows, LANES)

    # Tile sizing: ~2 MiB per input per buffer (4096 rows f32 / 8192 rows bf16),
    # capped at ceil(rows/2) rounded to the sublane multiple so the "parallel"
    # grid axis has >= 2 steps whenever possible (v7x megacore split).
    itemsize = max(jnp.dtype(p_flat.dtype).itemsize,
                   jnp.dtype(g_flat.dtype).itemsize)
    max_tile_rows = max(sublane,
                        (TILE_BYTES // (LANES * itemsize)) // sublane * sublane)
    half_rows = (((rows + 1) // 2) + sublane - 1) // sublane * sublane
    tile_rows = min(max_tile_rows, half_rows, rows)
    num_blocks = (rows + tile_rows - 1) // tile_rows
    needs_mask = (num_blocks * tile_rows * LANES) != n

    chunk_rows = sublane
    chunks = tile_rows // chunk_rows
    unroll = min(8, chunks)

    kernel = functools.partial(
        _fidelity_kernel, n_valid=n, tile_rows=tile_rows, chunk_rows=chunk_rows,
        needs_mask=needs_mask, unroll=unroll)

    partials = pl.pallas_call(
        kernel,
        out_shape=jax.ShapeDtypeStruct((num_blocks * 8, LANES), jnp.float32),
        grid=(num_blocks,),
        in_specs=[
            pl.BlockSpec((tile_rows, LANES), lambda i: (i, 0)),
            pl.BlockSpec((tile_rows, LANES), lambda i: (i, 0)),
        ],
        out_specs=pl.BlockSpec((8, LANES), lambda i: (i, 0)),
        compiler_params=pltpu.CompilerParams(
            dimension_semantics=("parallel",),
            vmem_limit_bytes=VMEM_LIMIT_BYTES),
    )(p2d, g2d)

    # loss = 1 - term  =>  mean(loss) = 1 - sum(term) / N
    return jnp.float32(1.0) - jnp.sum(partials) / jnp.float32(n)


def _reference(p, g):
    pf = jnp.ravel(p).astype(jnp.float32)
    gf = jnp.ravel(g).astype(jnp.float32)
    loss = 1.0 - (jnp.sqrt(pf * gf + EPS) + jnp.sqrt((1.0 - pf) * (1.0 - gf) + EPS))
    return jnp.mean(loss)


if __name__ == "__main__":
    key = jax.random.PRNGKey(0)
    loss_fn = jax.jit(fidelity_loss)

    # Main case consistent with the module: per-pixel probabilities flattened
    # by view(-1, 1).  2048 elements -> 2 grid blocks, no mask path.
    shape = (2, 4, 16, 16)
    kp, kg = jax.random.split(key)
    p = jax.random.uniform(kp, shape, dtype=jnp.float32)
    g = jax.random.uniform(kg, shape, dtype=jnp.float32)
    out = jax.block_until_ready(loss_fn(p, g))
    ref = _reference(p, g)
    assert jnp.allclose(out, ref, atol=1e-5, rtol=1e-5), (out, ref)

    # Ragged size, single block: exercises the pad + mask path.
    kp2, kg2 = jax.random.split(jax.random.fold_in(key, 1))
    p2 = jax.random.uniform(kp2, (3, 5, 7), dtype=jnp.float32)
    g2 = jax.random.uniform(kg2, (3, 5, 7), dtype=jnp.float32)
    out2 = jax.block_until_ready(loss_fn(p2, g2))
    ref2 = _reference(p2, g2)
    assert jnp.allclose(out2, ref2, atol=1e-5, rtol=1e-5), (out2, ref2)

    # Ragged size, multi-block with a ragged last block: exercises the
    # edge-block + last-step mask path.
    kp3, kg3 = jax.random.split(jax.random.fold_in(key, 2))
    p3 = jax.random.uniform(kp3, (7, 333), dtype=jnp.float32)
    g3 = jax.random.uniform(kg3, (7, 333), dtype=jnp.float32)
    out3 = jax.block_until_ready(loss_fn(p3, g3))
    ref3 = _reference(p3, g3)
    assert jnp.allclose(out3, ref3, atol=1e-5, rtol=1e-5), (out3, ref3)

    print("KERNEL_OK")
</pallas_src>

<mosaic_0001>
module attributes {stable_mosaic.version = 11 : i64} {
  func.func @_fidelity_kernel(%arg0: i32, %arg1: memref<8x128xf32, #tpu.memory_space<vmem>>, %arg2: memref<8x128xf32, #tpu.memory_space<vmem>>, %arg3: memref<8x128xf32, #tpu.memory_space<vmem>>) attributes {dimension_semantics = [#tpu.dimension_semantics<parallel>], iteration_bounds = array<i64: 2>, scalar_prefetch = 0 : i64, scratch_operands = 0 : i64, tpu.core_type = #tpu.core_type<tc>, window_params = [{transform_indices = @transform_0, window_bounds = array<i64: 8, 128>}, {transform_indices = @transform_1, window_bounds = array<i64: 8, 128>}, {transform_indices = @transform_2, window_bounds = array<i64: 8, 128>}]} {
    %cst = arith.constant 0.000000e+00 : f32
    %0 = vector.broadcast %cst : f32 to vector<8x128xf32>
    %c0_i32 = arith.constant 0 : i32
    %c8_i32 = arith.constant 8 : i32
    %1 = arith.muli %c0_i32, %c8_i32 : i32
    %2 = tpu.assume_multiple %1, 8 : i32
    %3 = arith.index_cast %2 : i32 to index
    %c0 = arith.constant 0 : index
    %4 = vector.load %arg1[%3, %c0] : memref<8x128xf32, #tpu.memory_space<vmem>>, vector<8x128xf32>
    %5 = arith.index_cast %2 : i32 to index
    %c0_0 = arith.constant 0 : index
    %6 = vector.load %arg2[%5, %c0_0] : memref<8x128xf32, #tpu.memory_space<vmem>>, vector<8x128xf32>
    %7 = arith.mulf %4, %6 : vector<8x128xf32>
    %cst_1 = arith.constant 9.99999993E-9 : f32
    %8 = vector.broadcast %cst_1 : f32 to vector<8x128xf32>
    %9 = arith.addf %7, %8 : vector<8x128xf32>
    %10 = math.sqrt %9 : vector<8x128xf32>
    %cst_2 = arith.constant 1.000000e+00 : f32
    %11 = vector.broadcast %cst_2 : f32 to vector<8x128xf32>
    %12 = arith.subf %11, %4 : vector<8x128xf32>
    %cst_3 = arith.constant 1.000000e+00 : f32
    %13 = vector.broadcast %cst_3 : f32 to vector<8x128xf32>
    %14 = arith.subf %13, %6 : vector<8x128xf32>
    %15 = arith.mulf %12, %14 : vector<8x128xf32>
    %cst_4 = arith.constant 9.99999993E-9 : f32
    %16 = vector.broadcast %cst_4 : f32 to vector<8x128xf32>
    %17 = arith.addf %15, %16 : vector<8x128xf32>
    %18 = math.sqrt %17 : vector<8x128xf32>
    %19 = arith.addf %10, %18 : vector<8x128xf32>
    %20 = arith.addf %0, %19 : vector<8x128xf32>
    %c1_i32 = arith.constant 1 : i32
    %21 = vector.shape_cast %20 : vector<8x128xf32> to vector<1x8x128xf32>
    %cst_5 = arith.constant dense<0.000000e+00> : vector<8x128xf32>
    %22 = vector.multi_reduction <add>, %21, %cst_5 [0] : vector<1x8x128xf32> to vector<8x128xf32>
    %c0_6 = arith.constant 0 : index
    %c0_7 = arith.constant 0 : index
    %23 = vector.load %arg3[%c0_6, %c0_7] : memref<8x128xf32, #tpu.memory_space<vmem>>, vector<8x128xf32>
    tpu.vector_store %arg3[%c0_6, %c0_7], %22 {strides = array<i32>} : memref<8x128xf32, #tpu.memory_space<vmem>>, vector<8x128xf32>,
    return
  }
  func.func @transform_0(%arg0: i32) -> (i32, i32) {
    %c0_i32 = arith.constant 0 : i32
    %c0_i32_0 = arith.constant 0 : i32
    return %arg0, %c0_i32 : i32, i32
  }
  func.func @transform_1(%arg0: i32) -> (i32, i32) {
    %c0_i32 = arith.constant 0 : i32
    %c0_i32_0 = arith.constant 0 : i32
    return %arg0, %c0_i32 : i32, i32
  }
  func.func @transform_2(%arg0: i32) -> (i32, i32) {
    %c0_i32 = arith.constant 0 : i32
    %c0_i32_0 = arith.constant 0 : i32
    return %arg0, %c0_i32 : i32, i32
  }
}

</mosaic_0001>

<llo_original>
// kernel: fidelity_loss.1
$region0: #{fidelity_loss.1}
  #allocation0 [shape = 'u32[]', space=smem, size = 0x4, offset = 0x4, fixed_abs, tag = 'smem constant byte address 0x4 - core index']
  #allocation1 [shape = 'u32[144,128]{1,0:T(1,128)}', space=vmem, size = 0x12000, scoped, tag = 'internal scratch']
  %s0 = inlined_call_operand.vmem [shape: f32[16,128], index: 0, kind: input, shape index: {}]
  %s1 = inlined_call_operand.vmem [shape: f32[16,128], index: 1, kind: input, shape index: {}]
  %s2 = inlined_call_operand.vmem [shape: f32[16,128], index: 2, kind: output, shape index: {}]
  %s3 = sld [smem:[#allocation0]]
  $region41: #{fidelity_loss.1} parent=0
    _
  %s5 = ssub.s32 1, %s3
  %s6 = scalar_select 0, %s5, %s3
  loop: start=0, step=1, limit=4
  $region2: #{fidelity_loss.1} parent=0 // loop_pre_header
    _
  $region3: #{fidelity_loss.1} parent=0 // loop_header
    %s8 = sphi 0, %s12
    %p9 = scmp.ge.s32.totalorder %s8, 4
    %s18 = sphi 0, %s20
    %s21 = sphi 0, %s18
    %s22 = sphi 0, %s21
    %s38 = sphi 0, %s22
    %s44 = sphi 0, %s46
    %s47 = sphi 0, %s44
    %s48 = sphi 0, %s47
    %s64 = sphi 0, %s48
    %s70 = sphi 0, %s72
    %s73 = sphi 0, %s70
    %s74 = sphi 0, %s73
    %s90 = sphi 0, %s74
  $region4: #{fidelity_loss.1} parent=0 // loop_header_branch
    %11 = sbr.rel (%p9) target = $region8
  $region5: #{fidelity_loss.1} parent=0 // loop_body
    %s13 = ssub.s32 %s8, 1
    %s14 = ssub.s32 %s8, 2
    %s15 = sadd.s32 %s8, 1
    %s16 = ssub.s32 %s8, %s15
    %p17 = scmp.eq.s32.totalorder %s16, 0
    %s19 = sadd.s32 %s18, 1
    %s20 = scalar_select %p17, %s18, %s19
    %p23 = pneg %p17
    %p24 = scmp.eq.s32.totalorder %s8, 1
    %p25 = por %p23, %p24
    %p26 = scmp.ne.s32.totalorder %s18, %s21
    %p27 = scmp.eq.s32.totalorder %s8, 0
    %p28 = por %p26, %p27
    %p29 = scmp.ne.s32.totalorder %s18, %s21
    %p30 = scmp.eq.s32.totalorder %s13, 1
    %p31 = por %p29, %p30
    %p32 = scmp.ne.s32.totalorder %s21, %s22
    %p33 = scmp.eq.s32.totalorder %s13, 0
    %p34 = por %p32, %p33
    %p35 = scmp.ne.s32.totalorder %s21, %s22
    %p36 = scmp.eq.s32.totalorder %s14, 1
    %p37 = por %p35, %p36
    %p39 = scmp.ne.s32.totalorder %s22, %s38
    %p40 = scmp.eq.s32.totalorder %s14, 0
    %p41 = por %p39, %p40
    %s42 = ssub.s32 %s8, %s15
    %p43 = scmp.eq.s32.totalorder %s42, 0
    %s45 = sadd.s32 %s44, 1
    %s46 = scalar_select %p43, %s44, %s45
    %p49 = pneg %p43
    %p50 = scmp.eq.s32.totalorder %s8, 1
    %p51 = por %p49, %p50
    %p52 = scmp.ne.s32.totalorder %s44, %s47
    %p53 = scmp.eq.s32.totalorder %s8, 0
    %p54 = por %p52, %p53
    %p55 = scmp.ne.s32.totalorder %s44, %s47
    %p56 = scmp.eq.s32.totalorder %s13, 1
    %p57 = por %p55, %p56
    %p58 = scmp.ne.s32.totalorder %s47, %s48
    %p59 = scmp.eq.s32.totalorder %s13, 0
    %p60 = por %p58, %p59
    %p61 = scmp.ne.s32.totalorder %s47, %s48
    %p62 = scmp.eq.s32.totalorder %s14, 1
    %p63 = por %p61, %p62
    %p65 = scmp.ne.s32.totalorder %s48, %s64
    %p66 = scmp.eq.s32.totalorder %s14, 0
    %p67 = por %p65, %p66
    %s68 = ssub.s32 %s8, %s15
    %p69 = scmp.eq.s32.totalorder %s68, 0
    %s71 = sadd.s32 %s70, 1
    %s72 = scalar_select %p69, %s70, %s71
    %p75 = pneg %p69
    %p76 = scmp.eq.s32.totalorder %s8, 1
    %p77 = por %p75, %p76
    %p78 = scmp.ne.s32.totalorder %s70, %s73
    %p79 = scmp.eq.s32.totalorder %s8, 0
    %p80 = por %p78, %p79
    %p81 = scmp.ne.s32.totalorder %s70, %s73
    %p82 = scmp.eq.s32.totalorder %s13, 1
    %p83 = por %p81, %p82
    %p84 = scmp.ne.s32.totalorder %s73, %s74
    %p85 = scmp.eq.s32.totalorder %s13, 0
    %p86 = por %p84, %p85
    %p87 = scmp.ne.s32.totalorder %s73, %s74
    %p88 = scmp.eq.s32.totalorder %s14, 1
    %p89 = por %p87, %p88
    %p91 = scmp.ne.s32.totalorder %s74, %s90
    %p92 = scmp.eq.s32.totalorder %s14, 0
    %p93 = por %p91, %p92
    %p94 = scmp.le.s32.totalorder 1, %s8
    %p95 = scmp.lt.s32.totalorder %s8, 3
    %p96 = pnand %p94, %p95
    %p97 = pneg %p96
    // Predicated region
    $region9: #{fidelity_loss.1} parent=5 // pred_check
      _
    $region10: #{fidelity_loss.1} parent=5 // pred_check_branch
      %99 = sbr.rel (%p96) target = $region12
    $region11: #{fidelity_loss.1} parent=5 // pred_region
      %s100 = ssub.s32 %s8, 1
    $region12: #{fidelity_loss.1} parent=5 // pred_fallthru
      _
    %p101 = scmp.lt.s32.totalorder %s8, 2
    // Predicated region
    $region13: #{fidelity_loss.1} parent=5 // pred_check
      %p102 = pneg %p101
    $region14: #{fidelity_loss.1} parent=5 // pred_check_branch
      %104 = sbr.rel (%p102) target = $region16
    $region15: #{fidelity_loss.1} parent=5 // pred_region
      // Predicated region
      $region17: #{fidelity_loss.1} parent=15 // pred_check
        %p105 = pneg %p28
      $region18: #{fidelity_loss.1} parent=15 // pred_check_branch
        %107 = sbr.rel (%p105) target = $region20
      $region19: #{fidelity_loss.1} parent=15 // pred_region
        %p108 = scmp.lt.s32.totalorder %s8, 1
        %s109 = scalar_select %p108, %s8, 1
        %s110 = smul.addr %s109, 8
        %s111 = scalar_lea.vmem %s0, %s110
      $region20: #{fidelity_loss.1} parent=15 // pred_fallthru
        _
      // Predicated region
      $region21: #{fidelity_loss.1} parent=15 // pred_check
        %p112 = pneg %p54
      $region22: #{fidelity_loss.1} parent=15 // pred_check_branch
        %114 = sbr.rel (%p112) target = $region24
      $region23: #{fidelity_loss.1} parent=15 // pred_region
        %p115 = scmp.lt.s32.totalorder %s8, 1
        %s116 = scalar_select %p115, %s8, 1
        %s117 = smul.addr %s116, 8
        %s118 = scalar_lea.vmem %s1, %s117
      $region24: #{fidelity_loss.1} parent=15 // pred_fallthru
        _
    $region16: #{fidelity_loss.1} parent=5 // pred_fallthru
      _
    %p119 = scmp.le.s32.totalorder 1, %s8
    %p120 = scmp.lt.s32.totalorder %s8, 3
    %p121 = pnand %p119, %p120
    %p122 = pneg %p121
    // Predicated region
    $region25: #{fidelity_loss.1} parent=5 // pred_check
      _
    $region26: #{fidelity_loss.1} parent=5 // pred_check_branch
      %124 = sbr.rel (%p121) target = $region28
    $region27: #{fidelity_loss.1} parent=5 // pred_region
      %s125 = ssub.s32 %s8, 1
      %p126 = scmp.lt.s32.totalorder %s13, 1
      %s127 = scalar_select %p126, %s13, 1
      %s128 = smul.addr %s127, 8
      %s129 = scalar_lea.vmem %s0, %s128
      %p130 = pneg %p34
      %p131 = pneg %p31
      %p132 = scmp.lt.s32.totalorder %s13, 1
      %s133 = scalar_select %p132, %s13, 1
      %s134 = smul.addr %s133, 8
      %s135 = scalar_lea.vmem %s1, %s134
      %p136 = pneg %p60
      %p137 = pneg %p57
      %p138 = pneg %p86
      %p139 = pneg %p83
      %p140 = scmp.lt.s32.totalorder %s13, 1
      %s141 = scalar_select %p140, %s13, 1
      %s142 = smul.addr %s141, 8
      %s143 = scalar_lea.vmem %s2, %s142
      %p144 = scmp.lt.s32.totalorder %s13, 1
      %s145 = scalar_select %p144, %s13, 1
      %s146 = smul.addr %s145, 8
      %s147 = scalar_lea.vmem %s0, %s146
      %p148 = scmp.lt.s32.totalorder %s13, 1
      %s149 = scalar_select %p148, %s13, 1
      %s150 = smul.addr %s149, 8
      %s151 = scalar_lea.vmem %s1, %s150
      %p152 = scmp.lt.s32.totalorder %s13, 1
      %s153 = scalar_select %p152, %s13, 1
      %s154 = smul.addr %s153, 8
      %s155 = scalar_lea.vmem %s2, %s154
      %v156 = vld [vmem:[%s147] sm:$0xff]
      %v157 = vld [vmem:[%s151] sm:$0xff]
      %v158 = vmul.f32 %v156, %v157
      %v159 = vadd.f32 %v158, 1e-08
      %v160 = vrsqrt.pop %v159
      %v161 = vmul.f32 %v159, %v160
      %vm162 = vcmp.eq.f32.partialorder %v159, inf
      %v163 = vsel %vm162, %v159, %v161
      %vm164 = vcmp.eq.f32.partialorder %v159, 0.0
      %v165 = vand.u32 %v159, 2147483648
      %v166 = vsel %vm164, %v165, %v163
      %v167 = vsub.f32 1.0, %v156
      %v168 = vsub.f32 1.0, %v157
      %v169 = vmul.f32 %v167, %v168
      %v170 = vadd.f32 %v169, 1e-08
      %v171 = vrsqrt.pop %v170
      %v172 = vmul.f32 %v170, %v171
      %vm173 = vcmp.eq.f32.partialorder %v170, inf
      %v174 = vsel %vm173, %v170, %v172
      %vm175 = vcmp.eq.f32.partialorder %v170, 0.0
      %v176 = vand.u32 %v170, 2147483648
      %v177 = vsel %vm175, %v176, %v174
      %v178 = vadd.f32 %v166, %v177
      %v179 = vadd.f32 %v178, 0.0
      %v180 = vadd.f32 %v179, 0.0
      %181 = vst [vmem:[%s155] sm:$0xff] %v180
      %p182 = scmp.lt.s32.totalorder %s13, 1
      %s183 = scalar_select %p182, %s13, 1
      %s184 = smul.addr %s183, 8
      %s185 = scalar_lea.vmem %s2, %s184
      // Predicated region
      $region29: #{fidelity_loss.1} parent=27 // pred_check
        %p186 = pneg %p83
      $region30: #{fidelity_loss.1} parent=27 // pred_check_branch
        %188 = sbr.rel (%p186) target = $region32
      $region31: #{fidelity_loss.1} parent=27 // pred_region
        _
      $region32: #{fidelity_loss.1} parent=27 // pred_fallthru
        _
    $region28: #{fidelity_loss.1} parent=5 // pred_fallthru
      _
    %p189 = scmp.le.s32.totalorder 2, %s8
    // Predicated region
    $region33: #{fidelity_loss.1} parent=5 // pred_check
      %p190 = pneg %p189
    $region34: #{fidelity_loss.1} parent=5 // pred_check_branch
      %192 = sbr.rel (%p190) target = $region36
    $region35: #{fidelity_loss.1} parent=5 // pred_region
      %s193 = ssub.s32 %s8, 2
      // Predicated region
      $region37: #{fidelity_loss.1} parent=35 // pred_check
        %p194 = pneg %p89
      $region38: #{fidelity_loss.1} parent=35 // pred_check_branch
        %196 = sbr.rel (%p194) target = $region40
      $region39: #{fidelity_loss.1} parent=35 // pred_region
        %p197 = scmp.lt.s32.totalorder %s14, 1
        %s198 = scalar_select %p197, %s14, 1
        %s199 = smul.addr %s198, 8
        %s200 = scalar_lea.vmem %s2, %s199
      $region40: #{fidelity_loss.1} parent=35 // pred_fallthru
        _
    $region36: #{fidelity_loss.1} parent=5 // pred_fallthru
      _
  $region6: #{fidelity_loss.1} parent=0 // loop_footer
    %s12 = sadd.s32 1, %s8
  $region7: #{fidelity_loss.1} parent=0 // loop_footer_branch
    %7 = sbr.rel target = $region3
  $region8: #{fidelity_loss.1} parent=0 // loop_exit
    _

</llo_original>
